<compile_context>
chip_gen: v7x
topology: tpu7x:2x2x1
jax: 0.10.0
libtpu: 0.0.40
codegen_flags: <defaults>
</compile_context>

<pallas_src>
import math

import jax
import jax.numpy as jnp
from jax.experimental import pallas as pl
from jax.experimental.pallas import tpu as pltpu

LANE = 128  # TPU vreg lane width


def _round_up(x, m):
    return ((x + m - 1) // m) * m


def mlp3_kernel(x_ref, w1_ref, wpack_ref, bpack_ref, o_ref):
    """Fused 3-layer MLP on lane-padded operands:
       relu(relu(relu(x@W1+b1)@W2+b2)@W3+b3)."""
    b = bpack_ref[...]  # (8, H_pad); rows 0..2 hold b1, b2, b3

    h = jnp.dot(x_ref[...], w1_ref[...], preferred_element_type=jnp.float32)
    h = jnp.maximum(h + b[0:1, :], 0.0)

    h = jnp.dot(h, wpack_ref[0], preferred_element_type=jnp.float32)
    h = jnp.maximum(h + b[1:2, :], 0.0)

    h = jnp.dot(h, wpack_ref[1], preferred_element_type=jnp.float32)
    h = jnp.maximum(h + b[2:3, :], 0.0)

    o_ref[...] = h.astype(o_ref.dtype)


def _pack_params(params):
    """Zero-pad / pack the logical params into lane-dense slabs."""
    w1, w2, w3 = params["w1"], params["w2"], params["w3"]
    b1, b2, b3 = params["b1"], params["b2"], params["b3"]

    C, H1 = w1.shape          # (num_channels, hidden)
    H_out = w3.shape[1]       # true output width (fixes w1.shape[1] assumption)
    C_pad = _round_up(C, LANE)
    H_pad = _round_up(max(H1, w2.shape[1], H_out), LANE)

    w1_pad = jnp.zeros((C_pad, H_pad), jnp.float32).at[:C, :H1].set(w1)

    wpack = jnp.zeros((2, H_pad, H_pad), jnp.float32)
    wpack = wpack.at[0, : w2.shape[0], : w2.shape[1]].set(w2)
    wpack = wpack.at[1, : w3.shape[0], : w3.shape[1]].set(w3)

    bpack = jnp.zeros((8, H_pad), jnp.float32)
    bpack = bpack.at[0, : b1.shape[-1]].set(b1.reshape(-1))
    bpack = bpack.at[1, : b2.shape[-1]].set(b2.reshape(-1))
    bpack = bpack.at[2, : b3.shape[-1]].set(b3.reshape(-1))

    return w1_pad, wpack, bpack, C, C_pad, H_pad, H_out


def mlp_base_forward(states, params, *, block_rows=512):
    """states: (B, num_channels) float32. params: dict of w1,b1,w2,b2,w3,b3."""
    B, C_in = states.shape
    w1_pad, wpack, bpack, C, C_pad, H_pad, H_out = _pack_params(params)
    assert C_in == C, "state feature width must match w1 fan-in"

    # Row tile: multiple of 8, no larger than needed; batch padded to a multiple
    # of the tile so the grid divides evenly.
    tile = min(block_rows, _round_up(B, 8))
    tile = max(8, _round_up(tile, 8))
    B_pad = _round_up(B, tile)

    # Lane-pad the features and row-pad the batch (zeros are inert: ReLU(0)=0).
    x_pad = jnp.zeros((B_pad, C_pad), jnp.float32).at[:B, :C].set(states)

    grid = (B_pad // tile,)

    out_pad = pl.pallas_call(
        mlp3_kernel,
        out_shape=jax.ShapeDtypeStruct((B_pad, H_pad), jnp.float32),
        grid=grid,
        in_specs=[
            # streaming activation tile
            pl.BlockSpec((tile, C_pad), lambda i: (i, 0)),
            # VMEM-resident weights / biases (same block every grid step)
            pl.BlockSpec((C_pad, H_pad), lambda i: (0, 0)),
            pl.BlockSpec((2, H_pad, H_pad), lambda i: (0, 0, 0)),
            pl.BlockSpec((8, H_pad), lambda i: (0, 0)),
        ],
        out_specs=pl.BlockSpec((tile, H_pad), lambda i: (i, 0)),
        compiler_params=pltpu.CompilerParams(
            dimension_semantics=("parallel",),  # v7x: shard batch over both TCs
        ),
    )(x_pad, w1_pad, wpack, bpack)

    return out_pad[:B, :H_out]


def init_mlp_base_params(key, num_channels, hidden=32):
    """He (kaiming-normal) init on weights, zero biases — matches
    initialize_weights_he applied to nn.Linear layers."""
    k1, k2, k3 = jax.random.split(key, 3)

    def he(k, fan_in, fan_out):
        std = math.sqrt(2.0 / fan_in)
        # stored as (in, out) = torch weight (out, in) transposed
        return jax.random.normal(k, (fan_in, fan_out), dtype=jnp.float32) * std

    return {
        "w1": he(k1, num_channels, hidden),
        "b1": jnp.zeros((1, hidden), jnp.float32),
        "w2": he(k2, hidden, hidden),
        "b2": jnp.zeros((1, hidden), jnp.float32),
        "w3": he(k3, hidden, hidden),
        "b3": jnp.zeros((1, hidden), jnp.float32),
    }


def reference_forward(states, params):
    h = jnp.maximum(states @ params["w1"] + params["b1"], 0.0)
    h = jnp.maximum(h @ params["w2"] + params["b2"], 0.0)
    h = jnp.maximum(h @ params["w3"] + params["b3"], 0.0)
    return h


if __name__ == "__main__":
    key = jax.random.PRNGKey(0)
    k_param, k_x, k_x_big = jax.random.split(key, 3)

    batch, num_channels, hidden = 8, 4, 32
    params = init_mlp_base_params(k_param, num_channels, hidden)

    fwd = jax.jit(mlp_base_forward)

    # Small batch (single grid step).
    states = jax.random.normal(k_x, (batch, num_channels), dtype=jnp.float32)
    out = jax.block_until_ready(fwd(states, params))
    ref = reference_forward(states, params)
    assert out.shape == (batch, hidden)
    assert jnp.allclose(out, ref, atol=1e-5, rtol=1e-5), "mismatch vs. reference (small)"

    # Larger batch: exercises the batch grid with resident weights.
    big_batch = 1024
    states_big = jax.random.normal(k_x_big, (big_batch, num_channels), dtype=jnp.float32)
    out_big = jax.block_until_ready(fwd(states_big, params))
    ref_big = reference_forward(states_big, params)
    assert out_big.shape == (big_batch, hidden)
    assert jnp.allclose(out_big, ref_big, atol=1e-5, rtol=1e-5), "mismatch vs. reference (big)"

    print("KERNEL_OK")
</pallas_src>

<mosaic_0001>
module attributes {stable_mosaic.version = 11 : i64} {
  func.func @mlp3_kernel(%arg0: i32, %arg1: memref<8x128xf32, #tpu.memory_space<vmem>>, %arg2: memref<128x128xf32, #tpu.memory_space<vmem>>, %arg3: memref<2x128x128xf32, #tpu.memory_space<vmem>>, %arg4: memref<8x128xf32, #tpu.memory_space<vmem>>, %arg5: memref<8x128xf32, #tpu.memory_space<vmem>>) attributes {dimension_semantics = [#tpu.dimension_semantics<parallel>], iteration_bounds = array<i64: 1>, scalar_prefetch = 0 : i64, scratch_operands = 0 : i64, tpu.core_type = #tpu.core_type<tc>, window_params = [{transform_indices = @transform_0, window_bounds = array<i64: 8, 128>}, {pipeline_mode = #tpu.pipeline_mode<synchronous>, transform_indices = @transform_1, window_bounds = array<i64: 128, 128>}, {pipeline_mode = #tpu.pipeline_mode<synchronous>, transform_indices = @transform_2, window_bounds = array<i64: 2, 128, 128>}, {pipeline_mode = #tpu.pipeline_mode<synchronous>, transform_indices = @transform_3, window_bounds = array<i64: 8, 128>}, {transform_indices = @transform_4, window_bounds = array<i64: 8, 128>}]} {
    %c0 = arith.constant 0 : index
    %c0_0 = arith.constant 0 : index
    %0 = vector.load %arg4[%c0, %c0_0] : memref<8x128xf32, #tpu.memory_space<vmem>>, vector<8x128xf32>
    %c0_1 = arith.constant 0 : index
    %c0_2 = arith.constant 0 : index
    %1 = vector.load %arg1[%c0_1, %c0_2] : memref<8x128xf32, #tpu.memory_space<vmem>>, vector<8x128xf32>
    %c0_3 = arith.constant 0 : index
    %c0_4 = arith.constant 0 : index
    %2 = vector.load %arg2[%c0_3, %c0_4] : memref<128x128xf32, #tpu.memory_space<vmem>>, vector<128x128xf32>
    %cst = arith.constant dense<0.000000e+00> : vector<8x128xf32>
    %3 = tpu.matmul %1, %2, %cst {dimension_numbers = #tpu.dot_dimension_numbers<[1], [0], [0], [1], [0, 0, 1, 1], [], []>} : vector<8x128xf32>, vector<128x128xf32>, vector<8x128xf32> -> vector<8x128xf32>
    %4 = vector.extract_strided_slice %0 {offsets = [0, 0], sizes = [1, 128], strides = [1, 1]} : vector<8x128xf32> to vector<1x128xf32>
    %5 = vector.broadcast %4 : vector<1x128xf32> to vector<8x128xf32>
    %6 = arith.addf %3, %5 : vector<8x128xf32>
    %cst_5 = arith.constant 0.000000e+00 : f32
    %7 = vector.broadcast %cst_5 : f32 to vector<8x128xf32>
    %8 = arith.maximumf %6, %7 : vector<8x128xf32>
    %c0_6 = arith.constant 0 : index
    %c0_7 = arith.constant 0 : index
    %c0_8 = arith.constant 0 : index
    %9 = vector.load %arg3[%c0_6, %c0_7, %c0_8] : memref<2x128x128xf32, #tpu.memory_space<vmem>>, vector<1x128x128xf32>
    %10 = vector.shape_cast %9 : vector<1x128x128xf32> to vector<128x128xf32>
    %cst_9 = arith.constant dense<0.000000e+00> : vector<8x128xf32>
    %11 = tpu.matmul %8, %10, %cst_9 {dimension_numbers = #tpu.dot_dimension_numbers<[1], [0], [0], [1], [0, 0, 1, 1], [], []>} : vector<8x128xf32>, vector<128x128xf32>, vector<8x128xf32> -> vector<8x128xf32>
    %12 = vector.extract_strided_slice %0 {offsets = [1, 0], sizes = [1, 128], strides = [1, 1]} : vector<8x128xf32> to vector<1x128xf32>
    %13 = vector.broadcast %12 : vector<1x128xf32> to vector<8x128xf32>
    %14 = arith.addf %11, %13 : vector<8x128xf32>
    %cst_10 = arith.constant 0.000000e+00 : f32
    %15 = vector.broadcast %cst_10 : f32 to vector<8x128xf32>
    %16 = arith.maximumf %14, %15 : vector<8x128xf32>
    %c1 = arith.constant 1 : index
    %c0_11 = arith.constant 0 : index
    %c0_12 = arith.constant 0 : index
    %17 = vector.load %arg3[%c1, %c0_11, %c0_12] : memref<2x128x128xf32, #tpu.memory_space<vmem>>, vector<1x128x128xf32>
    %18 = vector.shape_cast %17 : vector<1x128x128xf32> to vector<128x128xf32>
    %cst_13 = arith.constant dense<0.000000e+00> : vector<8x128xf32>
    %19 = tpu.matmul %16, %18, %cst_13 {dimension_numbers = #tpu.dot_dimension_numbers<[1], [0], [0], [1], [0, 0, 1, 1], [], []>} : vector<8x128xf32>, vector<128x128xf32>, vector<8x128xf32> -> vector<8x128xf32>
    %20 = vector.extract_strided_slice %0 {offsets = [2, 0], sizes = [1, 128], strides = [1, 1]} : vector<8x128xf32> to vector<1x128xf32>
    %21 = vector.broadcast %20 : vector<1x128xf32> to vector<8x128xf32>
    %22 = arith.addf %19, %21 : vector<8x128xf32>
    %cst_14 = arith.constant 0.000000e+00 : f32
    %23 = vector.broadcast %cst_14 : f32 to vector<8x128xf32>
    %24 = arith.maximumf %22, %23 : vector<8x128xf32>
    %c0_15 = arith.constant 0 : index
    %c0_16 = arith.constant 0 : index
    %25 = vector.load %arg5[%c0_15, %c0_16] : memref<8x128xf32, #tpu.memory_space<vmem>>, vector<8x128xf32>
    tpu.vector_store %arg5[%c0_15, %c0_16], %24 {strides = array<i32>} : memref<8x128xf32, #tpu.memory_space<vmem>>, vector<8x128xf32>,
    return
  }
  func.func @transform_0(%arg0: i32) -> (i32, i32) {
    %c0_i32 = arith.constant 0 : i32
    %c0_i32_0 = arith.constant 0 : i32
    return %arg0, %c0_i32 : i32, i32
  }
  func.func @transform_1(%arg0: i32) -> (i32, i32) {
    %c0_i32 = arith.constant 0 : i32
    %c0_i32_0 = arith.constant 0 : i32
    %c0_i32_1 = arith.constant 0 : i32
    return %c0_i32, %c0_i32_0 : i32, i32
  }
  func.func @transform_2(%arg0: i32) -> (i32, i32, i32) {
    %c0_i32 = arith.constant 0 : i32
    %c0_i32_0 = arith.constant 0 : i32
    %c0_i32_1 = arith.constant 0 : i32
    %c0_i32_2 = arith.constant 0 : i32
    return %c0_i32, %c0_i32_0, %c0_i32_1 : i32, i32, i32
  }
  func.func @transform_3(%arg0: i32) -> (i32, i32) {
    %c0_i32 = arith.constant 0 : i32
    %c0_i32_0 = arith.constant 0 : i32
    %c0_i32_1 = arith.constant 0 : i32
    return %c0_i32, %c0_i32_0 : i32, i32
  }
  func.func @transform_4(%arg0: i32) -> (i32, i32) {
    %c0_i32 = arith.constant 0 : i32
    %c0_i32_0 = arith.constant 0 : i32
    return %arg0, %c0_i32 : i32, i32
  }
}

</mosaic_0001>

<llo_original>
// kernel: mlp_base_forward.1
$region0: #{mlp_base_forward.1}
  #allocation0 [shape = 'u32[]', space=smem, size = 0x4, offset = 0x4, fixed_abs, tag = 'smem constant byte address 0x4 - core index']
  #allocation1 [shape = 'u32[144,128]{1,0:T(1,128)}', space=vmem, size = 0x12000, scoped, tag = 'internal scratch']
  %s0 = inlined_call_operand.vmem [shape: f32[8,128], index: 0, kind: input, shape index: {}]
  %s1 = inlined_call_operand.vmem [shape: f32[128,128], index: 1, kind: input, shape index: {}]
  %s2 = inlined_call_operand.vmem [shape: f32[2,128,128], index: 2, kind: input, shape index: {}]
  %s3 = inlined_call_operand.vmem [shape: f32[8,128], index: 3, kind: input, shape index: {}]
  %s4 = inlined_call_operand.hbm [shape: f32[8,128], index: 4, kind: output, shape index: {}]
  %s5 = sld [smem:[#allocation0]]
  $region26: #{mlp_base_forward.1} parent=0
    _
  %s7 = ssub.s32 1, %s5
  %s8 = scalar_select 0, %s7, %s5
  $region1: #{mlp_base_forward.1} parent=0
    #allocation2 [shape = 'u8[4096]{0}', space=vmem, size = 0x1000, scoped, tag = 'output window, operand 0, single buffered']
    #allocation3 [shape = 's32[1]{0}', space=sflag, size = 0x4, scoped, tag = 'scoped memory for mlp_base_forward.1']
    %9 = vsyncpa [#allocation3], 0
    // Predicated region
    $region2: #{mlp_base_forward.1} parent=1 // pred_check
      _
    $region3: #{mlp_base_forward.1} parent=1 // pred_check_branch
      %11 = sbr.rel (0) target = $region5
    $region4: #{mlp_base_forward.1} parent=1 // pred_region
      _
    $region5: #{mlp_base_forward.1} parent=1 // pred_fallthru
      _
    // Predicated region
    $region6: #{mlp_base_forward.1} parent=1 // pred_check
      _
    $region7: #{mlp_base_forward.1} parent=1 // pred_check_branch
      %13 = sbr.rel (0) target = $region9
    $region8: #{mlp_base_forward.1} parent=1 // pred_region
      _
    $region9: #{mlp_base_forward.1} parent=1 // pred_fallthru
      _
    // Predicated region
    $region10: #{mlp_base_forward.1} parent=1 // pred_check
      _
    $region11: #{mlp_base_forward.1} parent=1 // pred_check_branch
      %15 = sbr.rel (0) target = $region13
    $region12: #{mlp_base_forward.1} parent=1 // pred_region
      _
    $region13: #{mlp_base_forward.1} parent=1 // pred_fallthru
      _
    // Predicated region
    $region14: #{mlp_base_forward.1} parent=1 // pred_check
      _
    $region15: #{mlp_base_forward.1} parent=1 // pred_check_branch
      %17 = sbr.rel (0) target = $region17
    $region16: #{mlp_base_forward.1} parent=1 // pred_region
      _
    $region17: #{mlp_base_forward.1} parent=1 // pred_fallthru
      _
    %v18 = vld [vmem:[%s3] sm:$0xff]
    %v19 = vld [vmem:[%s0] sm:$0xff]
    %v20 = vld [vmem:[%s1] sm:$0xff]
    %v21 = vld [vmem:[%s1 + $0x8] sm:$0xff]
    %v22 = vld [vmem:[%s1 + $0x10] sm:$0xff]
    %v23 = vld [vmem:[%s1 + $0x18] sm:$0xff]
    %v24 = vld [vmem:[%s1 + $0x20] sm:$0xff]
    %v25 = vld [vmem:[%s1 + $0x28] sm:$0xff]
    %v26 = vld [vmem:[%s1 + $0x30] sm:$0xff]
    %v27 = vld [vmem:[%s1 + $0x38] sm:$0xff]
    %v28 = vld [vmem:[%s1 + $0x40] sm:$0xff]
    %v29 = vld [vmem:[%s1 + $0x48] sm:$0xff]
    %v30 = vld [vmem:[%s1 + $0x50] sm:$0xff]
    %v31 = vld [vmem:[%s1 + $0x58] sm:$0xff]
    %v32 = vld [vmem:[%s1 + $0x60] sm:$0xff]
    %v33 = vld [vmem:[%s1 + $0x68] sm:$0xff]
    %v34 = vld [vmem:[%s1 + $0x70] sm:$0xff]
    %v35 = vld [vmem:[%s1 + $0x78] sm:$0xff]
    %v36 = vlaneseq
    %v37 = vshrl.u32 %v36, 7
    %v38 = vsub.s32 0, %v37
    %v39 = vrot.slane %v18, %v38
    %40 = vmatprep.subr.mxu0 0.0
    %41 = vmatpush1.msra.mxu0 %v20
    %42 = vmatprep.subr.mxu0 0.0
    %43 = vmatpush1.msra.mxu0 %v21
    %44 = vmatprep.subr.mxu0 0.0
    %45 = vmatpush1.msra.mxu0 %v22
    %46 = vmatprep.subr.mxu0 0.0
    %47 = vmatpush1.msra.mxu0 %v23
    %48 = vmatprep.subr.mxu0 0.0
    %49 = vmatpush1.msra.mxu0 %v24
    %50 = vmatprep.subr.mxu0 0.0
    %51 = vmatpush1.msra.mxu0 %v25
    %52 = vmatprep.subr.mxu0 0.0
    %53 = vmatpush1.msra.mxu0 %v26
    %54 = vmatprep.subr.mxu0 0.0
    %55 = vmatpush1.msra.mxu0 %v27
    %56 = vmatprep.subr.mxu0 0.0
    %57 = vmatpush1.msra.mxu0 %v28
    %58 = vmatprep.subr.mxu0 0.0
    %59 = vmatpush1.msra.mxu0 %v29
    %60 = vmatprep.subr.mxu0 0.0
    %61 = vmatpush1.msra.mxu0 %v30
    %62 = vmatprep.subr.mxu0 0.0
    %63 = vmatpush1.msra.mxu0 %v31
    %64 = vmatprep.subr.mxu0 0.0
    %65 = vmatpush1.msra.mxu0 %v32
    %66 = vmatprep.subr.mxu0 0.0
    %67 = vmatpush1.msra.mxu0 %v33
    %68 = vmatprep.subr.mxu0 0.0
    %69 = vmatpush1.msra.mxu0 %v34
    %70 = vmatprep.subr.mxu0 0.0
    %71 = vmatpush1.msra.mxu0 %v35
    %72 = vmatprep.subr.mxu0 0.0
    %73 = vmatpush1.msra.mxu0 0.0
    %74 = vmatprep.subr.mxu0 0.0
    %75 = vmatpush1.msra.mxu0 0.0
    %76 = vmatprep.subr.mxu0 0.0
    %77 = vmatpush1.msra.mxu0 0.0
    %78 = vmatprep.subr.mxu0 0.0
    %79 = vmatpush1.msra.mxu0 0.0
    %80 = vmatprep.subr.mxu0 0.0
    %81 = vmatpush1.msra.mxu0 0.0
    %82 = vmatprep.subr.mxu0 0.0
    %83 = vmatpush1.msra.mxu0 0.0
    %84 = vmatprep.subr.mxu0 0.0
    %85 = vmatpush1.msra.mxu0 0.0
    %86 = vmatprep.subr.mxu0 0.0
    %87 = vmatpush1.msra.mxu0 0.0
    %88 = vmatprep.subr.mxu0 0.0
    %89 = vmatpush1.msra.mxu0 0.0
    %90 = vmatprep.subr.mxu0 0.0
    %91 = vmatpush1.msra.mxu0 0.0
    %92 = vmatprep.subr.mxu0 0.0
    %93 = vmatpush1.msra.mxu0 0.0
    %94 = vmatprep.subr.mxu0 0.0
    %95 = vmatpush1.msra.mxu0 0.0
    %96 = vmatprep.subr.mxu0 0.0
    %97 = vmatpush1.msra.mxu0 0.0
    %98 = vmatprep.subr.mxu0 0.0
    %99 = vmatpush1.msra.mxu0 0.0
    %100 = vmatprep.subr.mxu0 0.0
    %101 = vmatpush1.msra.mxu0 0.0
    %102 = vmatprep.subr.mxu0 0.0
    %103 = vmatpush1.msra.mxu0 0.0
    %104 = vmatprep.mubr.f32.mxu0 0.0
    %105 = vmatmul.mubr.f32.gmra.mrb[0].mxu0 %v19
    %v106 = vpop.f32.mrb[0].mxu0
    %v107 = vadd.f32 %v39, %v106
    %v108 = vpop.f32.mrb[0].mxu0
    %109 = vdwg.mxu0
    %v110 = vmax.f32 %v107, 0.0
    %v111 = vld [vmem:[%s2] sm:$0xff]
    %v112 = vld [vmem:[%s2 + $0x8] sm:$0xff]
    %v113 = vld [vmem:[%s2 + $0x10] sm:$0xff]
    %v114 = vld [vmem:[%s2 + $0x18] sm:$0xff]
    %v115 = vld [vmem:[%s2 + $0x20] sm:$0xff]
    %v116 = vld [vmem:[%s2 + $0x28] sm:$0xff]
    %v117 = vld [vmem:[%s2 + $0x30] sm:$0xff]
    %v118 = vld [vmem:[%s2 + $0x38] sm:$0xff]
    %v119 = vld [vmem:[%s2 + $0x40] sm:$0xff]
    %v120 = vld [vmem:[%s2 + $0x48] sm:$0xff]
    %v121 = vld [vmem:[%s2 + $0x50] sm:$0xff]
    %v122 = vld [vmem:[%s2 + $0x58] sm:$0xff]
    %v123 = vld [vmem:[%s2 + $0x60] sm:$0xff]
    %v124 = vld [vmem:[%s2 + $0x68] sm:$0xff]
    %v125 = vld [vmem:[%s2 + $0x70] sm:$0xff]
    %v126 = vld [vmem:[%s2 + $0x78] sm:$0xff]
    %v127 = vlaneseq
    %v128 = vshrl.u32 %v127, 7
    %v129 = vsub.s32 1, %v128
    %v130 = vrot.slane %v18, %v129
    %131 = vmatprep.subr.mxu0 0.0
    %132 = vmatpush1.msra.mxu0 %v111
    %133 = vmatprep.subr.mxu0 0.0
    %134 = vmatpush1.msra.mxu0 %v112
    %135 = vmatprep.subr.mxu0 0.0
    %136 = vmatpush1.msra.mxu0 %v113
    %137 = vmatprep.subr.mxu0 0.0
    %138 = vmatpush1.msra.mxu0 %v114
    %139 = vmatprep.subr.mxu0 0.0
    %140 = vmatpush1.msra.mxu0 %v115
    %141 = vmatprep.subr.mxu0 0.0
    %142 = vmatpush1.msra.mxu0 %v116
    %143 = vmatprep.subr.mxu0 0.0
    %144 = vmatpush1.msra.mxu0 %v117
    %145 = vmatprep.subr.mxu0 0.0
    %146 = vmatpush1.msra.mxu0 %v118
    %147 = vmatprep.subr.mxu0 0.0
    %148 = vmatpush1.msra.mxu0 %v119
    %149 = vmatprep.subr.mxu0 0.0
    %150 = vmatpush1.msra.mxu0 %v120
    %151 = vmatprep.subr.mxu0 0.0
    %152 = vmatpush1.msra.mxu0 %v121
    %153 = vmatprep.subr.mxu0 0.0
    %154 = vmatpush1.msra.mxu0 %v122
    %155 = vmatprep.subr.mxu0 0.0
    %156 = vmatpush1.msra.mxu0 %v123
    %157 = vmatprep.subr.mxu0 0.0
    %158 = vmatpush1.msra.mxu0 %v124
    %159 = vmatprep.subr.mxu0 0.0
    %160 = vmatpush1.msra.mxu0 %v125
    %161 = vmatprep.subr.mxu0 0.0
    %162 = vmatpush1.msra.mxu0 %v126
    %163 = vmatprep.subr.mxu0 0.0
    %164 = vmatpush1.msra.mxu0 0.0
    %165 = vmatprep.subr.mxu0 0.0
    %166 = vmatpush1.msra.mxu0 0.0
    %167 = vmatprep.subr.mxu0 0.0
    %168 = vmatpush1.msra.mxu0 0.0
    %169 = vmatprep.subr.mxu0 0.0
    %170 = vmatpush1.msra.mxu0 0.0
    %171 = vmatprep.subr.mxu0 0.0
    %172 = vmatpush1.msra.mxu0 0.0
    %173 = vmatprep.subr.mxu0 0.0
    %174 = vmatpush1.msra.mxu0 0.0
    %175 = vmatprep.subr.mxu0 0.0
    %176 = vmatpush1.msra.mxu0 0.0
    %177 = vmatprep.subr.mxu0 0.0
    %178 = vmatpush1.msra.mxu0 0.0
    %179 = vmatprep.subr.mxu0 0.0
    %180 = vmatpush1.msra.mxu0 0.0
    %181 = vmatprep.subr.mxu0 0.0
    %182 = vmatpush1.msra.mxu0 0.0
    %183 = vmatprep.subr.mxu0 0.0
    %184 = vmatpush1.msra.mxu0 0.0
    %185 = vmatprep.subr.mxu0 0.0
    %186 = vmatpush1.msra.mxu0 0.0
    %187 = vmatprep.subr.mxu0 0.0
    %188 = vmatpush1.msra.mxu0 0.0
    %189 = vmatprep.subr.mxu0 0.0
    %190 = vmatpush1.msra.mxu0 0.0
    %191 = vmatprep.subr.mxu0 0.0
    %192 = vmatpush1.msra.mxu0 0.0
    %193 = vmatprep.subr.mxu0 0.0
    %194 = vmatpush1.msra.mxu0 0.0
    %195 = vmatprep.mubr.f32.mxu0 0.0
    %196 = vmatmul.mubr.f32.gmra.mrb[0].mxu0 %v110
    %v197 = vpop.f32.mrb[0].mxu0
    %v198 = vadd.f32 %v130, %v197
    %v199 = vpop.f32.mrb[0].mxu0
    %200 = vdwg.mxu0
    %v201 = vmax.f32 %v198, 0.0
    %s202 = scalar_lea.vmem %s2, 128
    %v203 = vld [vmem:[%s202] sm:$0xff]
    %v204 = vld [vmem:[%s202 + $0x8] sm:$0xff]
    %v205 = vld [vmem:[%s202 + $0x10] sm:$0xff]
    %v206 = vld [vmem:[%s202 + $0x18] sm:$0xff]
    %v207 = vld [vmem:[%s202 + $0x20] sm:$0xff]
    %v208 = vld [vmem:[%s202 + $0x28] sm:$0xff]
    %v209 = vld [vmem:[%s202 + $0x30] sm:$0xff]
    %v210 = vld [vmem:[%s202 + $0x38] sm:$0xff]
    %v211 = vld [vmem:[%s202 + $0x40] sm:$0xff]
    %v212 = vld [vmem:[%s202 + $0x48] sm:$0xff]
    %v213 = vld [vmem:[%s202 + $0x50] sm:$0xff]
    %v214 = vld [vmem:[%s202 + $0x58] sm:$0xff]
    %v215 = vld [vmem:[%s202 + $0x60] sm:$0xff]
    %v216 = vld [vmem:[%s202 + $0x68] sm:$0xff]
    %v217 = vld [vmem:[%s202 + $0x70] sm:$0xff]
    %v218 = vld [vmem:[%s202 + $0x78] sm:$0xff]
    %v219 = vlaneseq
    %v220 = vshrl.u32 %v219, 7
    %v221 = vsub.s32 2, %v220
    %v222 = vrot.slane %v18, %v221
    %223 = vmatprep.subr.mxu0 0.0
    %224 = vmatpush1.msra.mxu0 %v203
    %225 = vmatprep.subr.mxu0 0.0
    %226 = vmatpush1.msra.mxu0 %v204
    %227 = vmatprep.subr.mxu0 0.0
    %228 = vmatpush1.msra.mxu0 %v205
    %229 = vmatprep.subr.mxu0 0.0
    %230 = vmatpush1.msra.mxu0 %v206
    %231 = vmatprep.subr.mxu0 0.0
    %232 = vmatpush1.msra.mxu0 %v207
    %233 = vmatprep.subr.mxu0 0.0
    %234 = vmatpush1.msra.mxu0 %v208
    %235 = vmatprep.subr.mxu0 0.0
    %236 = vmatpush1.msra.mxu0 %v209
    %237 = vmatprep.subr.mxu0 0.0
    %238 = vmatpush1.msra.mxu0 %v210
    %239 = vmatprep.subr.mxu0 0.0
    %240 = vmatpush1.msra.mxu0 %v211
    %241 = vmatprep.subr.mxu0 0.0
    %242 = vmatpush1.msra.mxu0 %v212
    %243 = vmatprep.subr.mxu0 0.0
    %244 = vmatpush1.msra.mxu0 %v213
    %245 = vmatprep.subr.mxu0 0.0
    %246 = vmatpush1.msra.mxu0 %v214
    %247 = vmatprep.subr.mxu0 0.0
    %248 = vmatpush1.msra.mxu0 %v215
    %249 = vmatprep.subr.mxu0 0.0
    %250 = vmatpush1.msra.mxu0 %v216
    %251 = vmatprep.subr.mxu0 0.0
    %252 = vmatpush1.msra.mxu0 %v217
    %253 = vmatprep.subr.mxu0 0.0
    %254 = vmatpush1.msra.mxu0 %v218
    %255 = vmatprep.subr.mxu0 0.0
    %256 = vmatpush1.msra.mxu0 0.0
    %257 = vmatprep.subr.mxu0 0.0
    %258 = vmatpush1.msra.mxu0 0.0
    %259 = vmatprep.subr.mxu0 0.0
    %260 = vmatpush1.msra.mxu0 0.0
    %261 = vmatprep.subr.mxu0 0.0
    %262 = vmatpush1.msra.mxu0 0.0
    %263 = vmatprep.subr.mxu0 0.0
    %264 = vmatpush1.msra.mxu0 0.0
    %265 = vmatprep.subr.mxu0 0.0
    %266 = vmatpush1.msra.mxu0 0.0
    %267 = vmatprep.subr.mxu0 0.0
    %268 = vmatpush1.msra.mxu0 0.0
    %269 = vmatprep.subr.mxu0 0.0
    %270 = vmatpush1.msra.mxu0 0.0
    %271 = vmatprep.subr.mxu0 0.0
    %272 = vmatpush1.msra.mxu0 0.0
    %273 = vmatprep.subr.mxu0 0.0
    %274 = vmatpush1.msra.mxu0 0.0
    %275 = vmatprep.subr.mxu0 0.0
    %276 = vmatpush1.msra.mxu0 0.0
    %277 = vmatprep.subr.mxu0 0.0
    %278 = vmatpush1.msra.mxu0 0.0
    %279 = vmatprep.subr.mxu0 0.0
    %280 = vmatpush1.msra.mxu0 0.0
    %281 = vmatprep.subr.mxu0 0.0
    %282 = vmatpush1.msra.mxu0 0.0
    %283 = vmatprep.subr.mxu0 0.0
    %284 = vmatpush1.msra.mxu0 0.0
    %285 = vmatprep.subr.mxu0 0.0
    %286 = vmatpush1.msra.mxu0 0.0
    %287 = vmatprep.mubr.f32.mxu0 0.0
    %288 = vmatmul.mubr.f32.gmra.mrb[0].mxu0 %v201
    %v289 = vpop.f32.mrb[0].mxu0
    %v290 = vadd.f32 %v222, %v289
    %v291 = vpop.f32.mrb[0].mxu0
    %292 = vdwg.mxu0
    %v293 = vmax.f32 %v290, 0.0
    %294 = vst [vmem:[#allocation2] sm:$0xff] %v293
    // Predicated region
    $region18: #{mlp_base_forward.1} parent=1 // pred_check
      _
    $region19: #{mlp_base_forward.1} parent=1 // pred_check_branch
      %296 = sbr.rel (0) target = $region21
    $region20: #{mlp_base_forward.1} parent=1 // pred_region
      %s298 = ssub.s32 128, 128
      %299 = vsyncadd [#allocation3], %s298
      %s301 = sshll.u32 [#allocation2], 4
      %s302 = int_to_ptr.vmem [resolvable:$true] %s301
      %304 = dma.vmem_to_hbm [thread:$0]  %s302, 128, %s4, [#allocation3]
    $region21: #{mlp_base_forward.1} parent=1 // pred_fallthru
      _
    // Predicated region
    $region22: #{mlp_base_forward.1} parent=1 // pred_check
      _
    $region23: #{mlp_base_forward.1} parent=1 // pred_check_branch
      %306 = sbr.rel (0) target = $region25
    $region24: #{mlp_base_forward.1} parent=1 // pred_region
      %307 = dma.done [#allocation3], 128
    $region25: #{mlp_base_forward.1} parent=1 // pred_fallthru
      _
    %308 = vsyncpa [#allocation3], 1

</llo_original>
